<compile_context>
chip_gen: v5e
topology: v5e:2x2
jax: 0.10.0
libtpu: 0.0.40
codegen_flags: <defaults>
</compile_context>

<pallas_src>
import jax
import jax.numpy as jnp
from jax.experimental import pallas as pl
from jax.experimental.pallas import tpu as pltpu


def _round_up(x, m):
    return (x + m - 1) // m * m


def _mlp_kernel(x_ref,
                w1_ref, b1_ref,
                w2_ref, b2_ref,
                w3_ref, b3_ref,
                w4_ref, b4_ref,
                o_ref):
    # Layer 1: Linear (bf16 MXU, f32 acc) + bias + ReLU (f32 VPU)
    h = jnp.dot(x_ref[...], w1_ref[...], preferred_element_type=jnp.float32)
    h = jnp.maximum(h + b1_ref[...], 0.0)
    # Layer 2
    h = jnp.dot(h.astype(jnp.bfloat16), w2_ref[...],
                preferred_element_type=jnp.float32)
    h = jnp.maximum(h + b2_ref[...], 0.0)
    # Layer 3
    h = jnp.dot(h.astype(jnp.bfloat16), w3_ref[...],
                preferred_element_type=jnp.float32)
    h = jnp.maximum(h + b3_ref[...], 0.0)
    # Layer 4: Linear (no activation -- Q-values)
    out = jnp.dot(h.astype(jnp.bfloat16), w4_ref[...],
                  preferred_element_type=jnp.float32)
    o_ref[...] = (out + b4_ref[...]).astype(o_ref.dtype)


def _pad2(a, rows, cols):
    return jnp.pad(a, ((0, rows - a.shape[0]), (0, cols - a.shape[1])))


def net_forward(x, params, *, batch_tile=None):
    """Fused MLP forward. x: (B, input_size) f32. params: dict of f32 W/b."""
    B, in_size = x.shape
    hid = params["w1"].shape[1]
    out_size = params["w4"].shape[1]

    # Lane/sublane-friendly padded sizes (zero padding -> identical results).
    in_p = _round_up(in_size, 8)        # K of matmul 1: sublane multiple of 8
    hid_p = _round_up(hid, 128)         # lane-dense hidden
    out_p = _round_up(out_size, 128)    # lane-dense output -> unmasked vst

    if batch_tile is None:
        batch_tile = 128 if B >= 128 else min(_round_up(B, 8), 32)
    tb = batch_tile
    b_p = _round_up(B, tb)

    # Pad + cast once. Weights in bf16 (halves weight DMA, native MXU dtype);
    # biases stay f32 for the f32 epilogue.
    x_p = _pad2(x, b_p, in_p).astype(jnp.bfloat16)
    w1 = _pad2(params["w1"], in_p, hid_p).astype(jnp.bfloat16)
    w2 = _pad2(params["w2"], hid_p, hid_p).astype(jnp.bfloat16)
    w3 = _pad2(params["w3"], hid_p, hid_p).astype(jnp.bfloat16)
    w4 = _pad2(params["w4"], hid_p, out_p).astype(jnp.bfloat16)
    b1 = _pad2(params["b1"], 1, hid_p)
    b2 = _pad2(params["b2"], 1, hid_p)
    b3 = _pad2(params["b3"], 1, hid_p)
    b4 = _pad2(params["b4"], 1, out_p)

    # Constant index_map -> weight/bias blocks stay VMEM-resident across the
    # whole batch grid (no per-step re-DMA).
    def resident(shape):
        return pl.BlockSpec(shape, lambda i: (0, 0))

    out = pl.pallas_call(
        _mlp_kernel,
        out_shape=jax.ShapeDtypeStruct((b_p, out_p), jnp.float32),
        grid=(b_p // tb,),
        in_specs=[
            pl.BlockSpec((tb, in_p), lambda i: (i, 0)),   # x: tiled over batch
            resident(w1.shape), resident(b1.shape),
            resident(w2.shape), resident(b2.shape),
            resident(w3.shape), resident(b3.shape),
            resident(w4.shape), resident(b4.shape),
        ],
        out_specs=pl.BlockSpec((tb, out_p), lambda i: (i, 0)),
        compiler_params=pltpu.CompilerParams(
            # Batch tiles are independent -> shard across v7x's 2 TensorCores.
            dimension_semantics=("parallel",),
        ),
        # TODO(synk): if hidden_size / batch are ever scaled up, shrink tiles
        # and set vmem_limit_bytes for v7x's 64 MiB VMEM; today's footprint is
        # a few tens of KB so defaults are fine.
    )(x_p, w1, b1, w2, b2, w3, b3, w4, b4)
    return out[:B, :out_size]


def init_params(key, input_size, hidden_size, output_size):
    """Deterministic synthetic init (PyTorch-style uniform fan-in scaling)."""
    sizes = [(input_size, hidden_size),
             (hidden_size, hidden_size),
             (hidden_size, hidden_size),
             (hidden_size, output_size)]
    params = {}
    for i, (fan_in, fan_out) in enumerate(sizes, start=1):
        key, kw, kb = jax.random.split(key, 3)
        bound = 1.0 / jnp.sqrt(fan_in)
        params[f"w{i}"] = jax.random.uniform(
            kw, (fan_in, fan_out), jnp.float32, -bound, bound)
        params[f"b{i}"] = jax.random.uniform(
            kb, (1, fan_out), jnp.float32, -bound, bound)
    return params


def net_forward_ref(x, params, matmul_dtype=jnp.float32):
    """Plain-JAX reference. matmul_dtype=bf16 mirrors the kernel's MXU math."""
    def lin(h, w, b):
        y = jnp.dot(h.astype(matmul_dtype), w.astype(matmul_dtype),
                    preferred_element_type=jnp.float32)
        return y + b
    h = jnp.maximum(lin(x, params["w1"], params["b1"]), 0.0)
    h = jnp.maximum(lin(h, params["w2"], params["b2"]), 0.0)
    h = jnp.maximum(lin(h, params["w3"], params["b3"]), 0.0)
    return lin(h, params["w4"], params["b4"])


if __name__ == "__main__":
    # Roboschool Pong-ish sizes: 13-dim observation, 32 hidden, 2 actions.
    # batch=64 with batch_tile=32 exercises a 2-step grid with resident weights.
    batch, input_size, hidden_size, output_size = 64, 13, 32, 2

    key = jax.random.PRNGKey(0)
    key, kx = jax.random.split(key)
    x = jax.random.normal(kx, (batch, input_size), jnp.float32)
    params = init_params(key, input_size, hidden_size, output_size)

    out = jax.block_until_ready(net_forward(x, params))
    assert out.shape == (batch, output_size)

    # Exact check vs a reference that mirrors the kernel's bf16-matmul math.
    ref_bf16 = net_forward_ref(x, params, matmul_dtype=jnp.bfloat16)
    assert jnp.allclose(out, ref_bf16, atol=1e-4, rtol=1e-4)

    # Fidelity vs the original full-f32 PyTorch semantics (bf16 rounding only).
    ref_f32 = net_forward_ref(x, params)
    assert jnp.allclose(out, ref_f32, atol=5e-2, rtol=5e-2)

    print("KERNEL_OK")
</pallas_src>

<mosaic_0001>
module attributes {stable_mosaic.version = 11 : i64} {
  func.func @_mlp_kernel(%arg0: i32, %arg1: memref<32x16xbf16, #tpu.memory_space<vmem>>, %arg2: memref<16x128xbf16, #tpu.memory_space<vmem>>, %arg3: memref<1x128xf32, #tpu.memory_space<vmem>>, %arg4: memref<128x128xbf16, #tpu.memory_space<vmem>>, %arg5: memref<1x128xf32, #tpu.memory_space<vmem>>, %arg6: memref<128x128xbf16, #tpu.memory_space<vmem>>, %arg7: memref<1x128xf32, #tpu.memory_space<vmem>>, %arg8: memref<128x128xbf16, #tpu.memory_space<vmem>>, %arg9: memref<1x128xf32, #tpu.memory_space<vmem>>, %arg10: memref<32x128xf32, #tpu.memory_space<vmem>>) attributes {dimension_semantics = [#tpu.dimension_semantics<parallel>], iteration_bounds = array<i64: 2>, scalar_prefetch = 0 : i64, scratch_operands = 0 : i64, tpu.core_type = #tpu.core_type<tc>, window_params = [{transform_indices = @transform_0, window_bounds = array<i64: 32, 16>}, {pipeline_mode = #tpu.pipeline_mode<synchronous>, transform_indices = @transform_1, window_bounds = array<i64: 16, 128>}, {pipeline_mode = #tpu.pipeline_mode<synchronous>, transform_indices = @transform_2, window_bounds = array<i64: 1, 128>}, {pipeline_mode = #tpu.pipeline_mode<synchronous>, transform_indices = @transform_3, window_bounds = array<i64: 128, 128>}, {pipeline_mode = #tpu.pipeline_mode<synchronous>, transform_indices = @transform_4, window_bounds = array<i64: 1, 128>}, {pipeline_mode = #tpu.pipeline_mode<synchronous>, transform_indices = @transform_5, window_bounds = array<i64: 128, 128>}, {pipeline_mode = #tpu.pipeline_mode<synchronous>, transform_indices = @transform_6, window_bounds = array<i64: 1, 128>}, {pipeline_mode = #tpu.pipeline_mode<synchronous>, transform_indices = @transform_7, window_bounds = array<i64: 128, 128>}, {pipeline_mode = #tpu.pipeline_mode<synchronous>, transform_indices = @transform_8, window_bounds = array<i64: 1, 128>}, {transform_indices = @transform_9, window_bounds = array<i64: 32, 128>}]} {
    %c0 = arith.constant 0 : index
    %c0_0 = arith.constant 0 : index
    %0 = vector.load %arg1[%c0, %c0_0] : memref<32x16xbf16, #tpu.memory_space<vmem>>, vector<32x16xbf16>
    %c0_1 = arith.constant 0 : index
    %c0_2 = arith.constant 0 : index
    %1 = vector.load %arg2[%c0_1, %c0_2] : memref<16x128xbf16, #tpu.memory_space<vmem>>, vector<16x128xbf16>
    %cst = arith.constant dense<0.000000e+00> : vector<32x128xf32>
    %2 = tpu.matmul %0, %1, %cst {dimension_numbers = #tpu.dot_dimension_numbers<[1], [0], [0], [1], [0, 0, 1, 1], [], []>} : vector<32x16xbf16>, vector<16x128xbf16>, vector<32x128xf32> -> vector<32x128xf32>
    %c0_3 = arith.constant 0 : index
    %c0_4 = arith.constant 0 : index
    %3 = vector.load %arg3[%c0_3, %c0_4] : memref<1x128xf32, #tpu.memory_space<vmem>>, vector<1x128xf32>
    %4 = vector.broadcast %3 : vector<1x128xf32> to vector<32x128xf32>
    %5 = arith.addf %2, %4 : vector<32x128xf32>
    %cst_5 = arith.constant 0.000000e+00 : f32
    %6 = vector.broadcast %cst_5 : f32 to vector<32x128xf32>
    %7 = arith.maximumf %5, %6 : vector<32x128xf32>
    %8 = arith.truncf %7 : vector<32x128xf32> to vector<32x128xbf16>
    %c0_6 = arith.constant 0 : index
    %c0_7 = arith.constant 0 : index
    %9 = vector.load %arg4[%c0_6, %c0_7] : memref<128x128xbf16, #tpu.memory_space<vmem>>, vector<128x128xbf16>
    %cst_8 = arith.constant dense<0.000000e+00> : vector<32x128xf32>
    %10 = tpu.matmul %8, %9, %cst_8 {dimension_numbers = #tpu.dot_dimension_numbers<[1], [0], [0], [1], [0, 0, 1, 1], [], []>} : vector<32x128xbf16>, vector<128x128xbf16>, vector<32x128xf32> -> vector<32x128xf32>
    %c0_9 = arith.constant 0 : index
    %c0_10 = arith.constant 0 : index
    %11 = vector.load %arg5[%c0_9, %c0_10] : memref<1x128xf32, #tpu.memory_space<vmem>>, vector<1x128xf32>
    %12 = vector.broadcast %11 : vector<1x128xf32> to vector<32x128xf32>
    %13 = arith.addf %10, %12 : vector<32x128xf32>
    %cst_11 = arith.constant 0.000000e+00 : f32
    %14 = vector.broadcast %cst_11 : f32 to vector<32x128xf32>
    %15 = arith.maximumf %13, %14 : vector<32x128xf32>
    %16 = arith.truncf %15 : vector<32x128xf32> to vector<32x128xbf16>
    %c0_12 = arith.constant 0 : index
    %c0_13 = arith.constant 0 : index
    %17 = vector.load %arg6[%c0_12, %c0_13] : memref<128x128xbf16, #tpu.memory_space<vmem>>, vector<128x128xbf16>
    %cst_14 = arith.constant dense<0.000000e+00> : vector<32x128xf32>
    %18 = tpu.matmul %16, %17, %cst_14 {dimension_numbers = #tpu.dot_dimension_numbers<[1], [0], [0], [1], [0, 0, 1, 1], [], []>} : vector<32x128xbf16>, vector<128x128xbf16>, vector<32x128xf32> -> vector<32x128xf32>
    %c0_15 = arith.constant 0 : index
    %c0_16 = arith.constant 0 : index
    %19 = vector.load %arg7[%c0_15, %c0_16] : memref<1x128xf32, #tpu.memory_space<vmem>>, vector<1x128xf32>
    %20 = vector.broadcast %19 : vector<1x128xf32> to vector<32x128xf32>
    %21 = arith.addf %18, %20 : vector<32x128xf32>
    %cst_17 = arith.constant 0.000000e+00 : f32
    %22 = vector.broadcast %cst_17 : f32 to vector<32x128xf32>
    %23 = arith.maximumf %21, %22 : vector<32x128xf32>
    %24 = arith.truncf %23 : vector<32x128xf32> to vector<32x128xbf16>
    %c0_18 = arith.constant 0 : index
    %c0_19 = arith.constant 0 : index
    %25 = vector.load %arg8[%c0_18, %c0_19] : memref<128x128xbf16, #tpu.memory_space<vmem>>, vector<128x128xbf16>
    %cst_20 = arith.constant dense<0.000000e+00> : vector<32x128xf32>
    %26 = tpu.matmul %24, %25, %cst_20 {dimension_numbers = #tpu.dot_dimension_numbers<[1], [0], [0], [1], [0, 0, 1, 1], [], []>} : vector<32x128xbf16>, vector<128x128xbf16>, vector<32x128xf32> -> vector<32x128xf32>
    %c0_21 = arith.constant 0 : index
    %c0_22 = arith.constant 0 : index
    %27 = vector.load %arg9[%c0_21, %c0_22] : memref<1x128xf32, #tpu.memory_space<vmem>>, vector<1x128xf32>
    %28 = vector.broadcast %27 : vector<1x128xf32> to vector<32x128xf32>
    %29 = arith.addf %26, %28 : vector<32x128xf32>
    %c0_23 = arith.constant 0 : index
    %c0_24 = arith.constant 0 : index
    %30 = vector.load %arg10[%c0_23, %c0_24] : memref<32x128xf32, #tpu.memory_space<vmem>>, vector<32x128xf32>
    tpu.vector_store %arg10[%c0_23, %c0_24], %29 {strides = array<i32>} : memref<32x128xf32, #tpu.memory_space<vmem>>, vector<32x128xf32>,
    return
  }
  func.func @transform_0(%arg0: i32) -> (i32, i32) {
    %c0_i32 = arith.constant 0 : i32
    %c0_i32_0 = arith.constant 0 : i32
    return %arg0, %c0_i32 : i32, i32
  }
  func.func @transform_1(%arg0: i32) -> (i32, i32) {
    %c0_i32 = arith.constant 0 : i32
    %c0_i32_0 = arith.constant 0 : i32
    %c0_i32_1 = arith.constant 0 : i32
    return %c0_i32, %c0_i32_0 : i32, i32
  }
  func.func @transform_2(%arg0: i32) -> (i32, i32) {
    %c0_i32 = arith.constant 0 : i32
    %c0_i32_0 = arith.constant 0 : i32
    %c0_i32_1 = arith.constant 0 : i32
    return %c0_i32, %c0_i32_0 : i32, i32
  }
  func.func @transform_3(%arg0: i32) -> (i32, i32) {
    %c0_i32 = arith.constant 0 : i32
    %c0_i32_0 = arith.constant 0 : i32
    %c0_i32_1 = arith.constant 0 : i32
    return %c0_i32, %c0_i32_0 : i32, i32
  }
  func.func @transform_4(%arg0: i32) -> (i32, i32) {
    %c0_i32 = arith.constant 0 : i32
    %c0_i32_0 = arith.constant 0 : i32
    %c0_i32_1 = arith.constant 0 : i32
    return %c0_i32, %c0_i32_0 : i32, i32
  }
  func.func @transform_5(%arg0: i32) -> (i32, i32) {
    %c0_i32 = arith.constant 0 : i32
    %c0_i32_0 = arith.constant 0 : i32
    %c0_i32_1 = arith.constant 0 : i32
    return %c0_i32, %c0_i32_0 : i32, i32
  }
  func.func @transform_6(%arg0: i32) -> (i32, i32) {
    %c0_i32 = arith.constant 0 : i32
    %c0_i32_0 = arith.constant 0 : i32
    %c0_i32_1 = arith.constant 0 : i32
    return %c0_i32, %c0_i32_0 : i32, i32
  }
  func.func @transform_7(%arg0: i32) -> (i32, i32) {
    %c0_i32 = arith.constant 0 : i32
    %c0_i32_0 = arith.constant 0 : i32
    %c0_i32_1 = arith.constant 0 : i32
    return %c0_i32, %c0_i32_0 : i32, i32
  }
  func.func @transform_8(%arg0: i32) -> (i32, i32) {
    %c0_i32 = arith.constant 0 : i32
    %c0_i32_0 = arith.constant 0 : i32
    %c0_i32_1 = arith.constant 0 : i32
    return %c0_i32, %c0_i32_0 : i32, i32
  }
  func.func @transform_9(%arg0: i32) -> (i32, i32) {
    %c0_i32 = arith.constant 0 : i32
    %c0_i32_0 = arith.constant 0 : i32
    return %arg0, %c0_i32 : i32, i32
  }
}

</mosaic_0001>

<llo_original>
// kernel: tpu_custom_call.1
$region0: #{tpu_custom_call.1}
  #allocation0 [shape = 'u32[]', space=smem, size = 0x4, offset = 0x4, fixed_abs, tag = 'smem constant byte address 0x4 - core index']
  #allocation1 [shape = 'u32[72,128]{1,0:T(1,128)}', space=vmem, size = 0x9000, scoped, tag = 'internal scratch']
  %s0 = inlined_call_operand.vmem [shape: bf16[64,16], index: 0, kind: input, shape index: {}]
  %s1 = inlined_call_operand.vmem [shape: bf16[16,128], index: 1, kind: input, shape index: {}]
  %s2 = inlined_call_operand.vmem [shape: f32[1,128], index: 2, kind: input, shape index: {}]
  %s3 = inlined_call_operand.hbm [shape: bf16[128,128], index: 3, kind: input, shape index: {}]
  %s4 = inlined_call_operand.vmem [shape: f32[1,128], index: 4, kind: input, shape index: {}]
  %s5 = inlined_call_operand.hbm [shape: bf16[128,128], index: 5, kind: input, shape index: {}]
  %s6 = inlined_call_operand.vmem [shape: f32[1,128], index: 6, kind: input, shape index: {}]
  %s7 = inlined_call_operand.hbm [shape: bf16[128,128], index: 7, kind: input, shape index: {}]
  %s8 = inlined_call_operand.vmem [shape: f32[1,128], index: 8, kind: input, shape index: {}]
  %s9 = inlined_call_operand.hbm [shape: f32[64,128], index: 9, kind: output, shape index: {}]
  %s10 = sld [smem:[#allocation0]]
  $region81: #{tpu_custom_call.1} parent=0
    _
  %s12 = ssub.s32 1, %s10
  %s13 = scalar_select 0, %s12, %s10
  $region1: #{tpu_custom_call.1} parent=0
    #allocation2 [shape = 'u8[32768]{0}', space=vmem, size = 0x8000, scoped, tag = 'input window, operand 3, single buffered']
    #allocation3 [shape = 's32[2]{0}', space=sflag, size = 0x8, scoped, tag = 'scoped memory for tpu_custom_call.1']
    #allocation4 [shape = 's32[2]{0}', space=sflag, size = 0x8, scoped, tag = 'scoped memory for tpu_custom_call.1']
    #allocation5 [shape = 'u8[32768]{0}', space=vmem, size = 0x8000, scoped, tag = 'input window, operand 5, single buffered']
    #allocation6 [shape = 's32[1]{0}', space=sflag, size = 0x4, scoped, tag = 'scoped memory for tpu_custom_call.1']
    #allocation7 [shape = 'u8[32768]{0}', space=vmem, size = 0x8000, scoped, tag = 'input window, operand 7, single buffered']
    #allocation8 [shape = 'u8[32768]{0}', space=vmem, size = 0x8000, scoped, tag = 'output window, operand 0']
    %14 = vsyncpa [#allocation3], 0
    %15 = vsyncpa [#allocation6], 0
    %16 = vsyncpa [#allocation4], 0
    %s17 = scalar_lea.sflag [#allocation4], 1
    %18 = vsyncpa %s17, 0
    loop: start=0, step=1, limit=4
    $region2: #{tpu_custom_call.1} parent=1 // loop_pre_header
      _
    $region3: #{tpu_custom_call.1} parent=1 // loop_header
      %s20 = sphi 0, %s24
      %p21 = scmp.ge.s32.totalorder %s20, 4
      %s30 = sphi 0, %s32
      %s33 = sphi 0, %s30
      %s34 = sphi 0, %s33
      %s50 = sphi 0, %s34
      %s54 = sphi 0, %s54
      %s56 = sphi 0, %s54
      %s57 = sphi 0, %s56
      %s71 = sphi 0, %s57
      %s75 = sphi 0, %s75
      %s77 = sphi 0, %s75
      %s78 = sphi 0, %s77
      %s92 = sphi 0, %s78
      %s96 = sphi 0, %s96
      %s98 = sphi 0, %s96
      %s99 = sphi 0, %s98
      %s113 = sphi 0, %s99
      %s117 = sphi 0, %s117
      %s119 = sphi 0, %s117
      %s120 = sphi 0, %s119
      %s134 = sphi 0, %s120
      %s138 = sphi 0, %s138
      %s140 = sphi 0, %s138
      %s141 = sphi 0, %s140
      %s155 = sphi 0, %s141
      %s159 = sphi 0, %s159
      %s161 = sphi 0, %s159
      %s162 = sphi 0, %s161
      %s176 = sphi 0, %s162
      %s180 = sphi 0, %s180
      %s182 = sphi 0, %s180
      %s183 = sphi 0, %s182
      %s197 = sphi 0, %s183
      %s201 = sphi 0, %s201
      %s203 = sphi 0, %s201
      %s204 = sphi 0, %s203
      %s218 = sphi 0, %s204
      %s224 = sphi 0, %s226
      %s227 = sphi 0, %s224
      %s228 = sphi 0, %s227
      %s244 = sphi 0, %s228
    $region4: #{tpu_custom_call.1} parent=1 // loop_header_branch
      %23 = sbr.rel (%p21) target = $region8
    $region5: #{tpu_custom_call.1} parent=1 // loop_body
      %s25 = ssub.s32 %s20, 1
      %s26 = ssub.s32 %s20, 2
      %s27 = sadd.s32 %s20, 1
      %s28 = ssub.s32 %s20, %s27
      %p29 = scmp.eq.s32.totalorder %s28, 0
      %s31 = sadd.s32 %s30, 1
      %s32 = scalar_select %p29, %s30, %s31
      %p35 = pneg %p29
      %p36 = scmp.eq.s32.totalorder %s20, 1
      %p37 = por %p35, %p36
      %p38 = scmp.ne.s32.totalorder %s30, %s33
      %p39 = scmp.eq.s32.totalorder %s20, 0
      %p40 = por %p38, %p39
      %p41 = scmp.ne.s32.totalorder %s30, %s33
      %p42 = scmp.eq.s32.totalorder %s25, 1
      %p43 = por %p41, %p42
      %p44 = scmp.ne.s32.totalorder %s33, %s34
      %p45 = scmp.eq.s32.totalorder %s25, 0
      %p46 = por %p44, %p45
      %p47 = scmp.ne.s32.totalorder %s33, %s34
      %p48 = scmp.eq.s32.totalorder %s26, 1
      %p49 = por %p47, %p48
      %p51 = scmp.ne.s32.totalorder %s34, %s50
      %p52 = scmp.eq.s32.totalorder %s26, 0
      %p53 = por %p51, %p52
      %s55 = sadd.s32 %s54, 1
      %p58 = scmp.eq.s32.totalorder %s20, 1
      %p59 = scmp.ne.s32.totalorder %s54, %s56
      %p60 = scmp.eq.s32.totalorder %s20, 0
      %p61 = por %p59, %p60
      %p62 = scmp.ne.s32.totalorder %s54, %s56
      %p63 = scmp.eq.s32.totalorder %s25, 1
      %p64 = por %p62, %p63
      %p65 = scmp.ne.s32.totalorder %s56, %s57
      %p66 = scmp.eq.s32.totalorder %s25, 0
      %p67 = por %p65, %p66
      %p68 = scmp.ne.s32.totalorder %s56, %s57
      %p69 = scmp.eq.s32.totalorder %s26, 1
      %p70 = por %p68, %p69
      %p72 = scmp.ne.s32.totalorder %s57, %s71
      %p73 = scmp.eq.s32.totalorder %s26, 0
      %p74 = por %p72, %p73
      %s76 = sadd.s32 %s75, 1
      %p79 = scmp.eq.s32.totalorder %s20, 1
      %p80 = scmp.ne.s32.totalorder %s75, %s77
      %p81 = scmp.eq.s32.totalorder %s20, 0
      %p82 = por %p80, %p81
      %p83 = scmp.ne.s32.totalorder %s75, %s77
      %p84 = scmp.eq.s32.totalorder %s25, 1
      %p85 = por %p83, %p84
      %p86 = scmp.ne.s32.totalorder %s77, %s78
      %p87 = scmp.eq.s32.totalorder %s25, 0
      %p88 = por %p86, %p87
      %p89 = scmp.ne.s32.totalorder %s77, %s78
      %p90 = scmp.eq.s32.totalorder %s26, 1
      %p91 = por %p89, %p90
      %p93 = scmp.ne.s32.totalorder %s78, %s92
      %p94 = scmp.eq.s32.totalorder %s26, 0
      %p95 = por %p93, %p94
      %s97 = sadd.s32 %s96, 1
      %p100 = scmp.eq.s32.totalorder %s20, 1
      %p101 = scmp.ne.s32.totalorder %s96, %s98
      %p102 = scmp.eq.s32.totalorder %s20, 0
      %p103 = por %p101, %p102
      %p104 = scmp.ne.s32.totalorder %s96, %s98
      %p105 = scmp.eq.s32.totalorder %s25, 1
      %p106 = por %p104, %p105
      %p107 = scmp.ne.s32.totalorder %s98, %s99
      %p108 = scmp.eq.s32.totalorder %s25, 0
      %p109 = por %p107, %p108
      %p110 = scmp.ne.s32.totalorder %s98, %s99
      %p111 = scmp.eq.s32.totalorder %s26, 1
      %p112 = por %p110, %p111
      %p114 = scmp.ne.s32.totalorder %s99, %s113
      %p115 = scmp.eq.s32.totalorder %s26, 0
      %p116 = por %p114, %p115
      %s118 = sadd.s32 %s117, 1
      %p121 = scmp.eq.s32.totalorder %s20, 1
      %p122 = scmp.ne.s32.totalorder %s117, %s119
      %p123 = scmp.eq.s32.totalorder %s20, 0
      %p124 = por %p122, %p123
      %p125 = scmp.ne.s32.totalorder %s117, %s119
      %p126 = scmp.eq.s32.totalorder %s25, 1
      %p127 = por %p125, %p126
      %p128 = scmp.ne.s32.totalorder %s119, %s120
      %p129 = scmp.eq.s32.totalorder %s25, 0
      %p130 = por %p128, %p129
      %p131 = scmp.ne.s32.totalorder %s119, %s120
      %p132 = scmp.eq.s32.totalorder %s26, 1
      %p133 = por %p131, %p132
      %p135 = scmp.ne.s32.totalorder %s120, %s134
      %p136 = scmp.eq.s32.totalorder %s26, 0
      %p137 = por %p135, %p136
      %s139 = sadd.s32 %s138, 1
      %p142 = scmp.eq.s32.totalorder %s20, 1
      %p143 = scmp.ne.s32.totalorder %s138, %s140
      %p144 = scmp.eq.s32.totalorder %s20, 0
      %p145 = por %p143, %p144
      %p146 = scmp.ne.s32.totalorder %s138, %s140
      %p147 = scmp.eq.s32.totalorder %s25, 1
      %p148 = por %p146, %p147
      %p149 = scmp.ne.s32.totalorder %s140, %s141
      %p150 = scmp.eq.s32.totalorder %s25, 0
      %p151 = por %p149, %p150
      %p152 = scmp.ne.s32.totalorder %s140, %s141
      %p153 = scmp.eq.s32.totalorder %s26, 1
      %p154 = por %p152, %p153
      %p156 = scmp.ne.s32.totalorder %s141, %s155
      %p157 = scmp.eq.s32.totalorder %s26, 0
      %p158 = por %p156, %p157
      %s160 = sadd.s32 %s159, 1
      %p163 = scmp.eq.s32.totalorder %s20, 1
      %p164 = scmp.ne.s32.totalorder %s159, %s161
      %p165 = scmp.eq.s32.totalorder %s20, 0
      %p166 = por %p164, %p165
      %p167 = scmp.ne.s32.totalorder %s159, %s161
      %p168 = scmp.eq.s32.totalorder %s25, 1
      %p169 = por %p167, %p168
      %p170 = scmp.ne.s32.totalorder %s161, %s162
      %p171 = scmp.eq.s32.totalorder %s25, 0
      %p172 = por %p170, %p171
      %p173 = scmp.ne.s32.totalorder %s161, %s162
      %p174 = scmp.eq.s32.totalorder %s26, 1
      %p175 = por %p173, %p174
      %p177 = scmp.ne.s32.totalorder %s162, %s176
      %p178 = scmp.eq.s32.totalorder %s26, 0
      %p179 = por %p177, %p178
      %s181 = sadd.s32 %s180, 1
      %p184 = scmp.eq.s32.totalorder %s20, 1
      %p185 = scmp.ne.s32.totalorder %s180, %s182
      %p186 = scmp.eq.s32.totalorder %s20, 0
      %p187 = por %p185, %p186
      %p188 = scmp.ne.s32.totalorder %s180, %s182
      %p189 = scmp.eq.s32.totalorder %s25, 1
      %p190 = por %p188, %p189
      %p191 = scmp.ne.s32.totalorder %s182, %s183
      %p192 = scmp.eq.s32.totalorder %s25, 0
      %p193 = por %p191, %p192
      %p194 = scmp.ne.s32.totalorder %s182, %s183
      %p195 = scmp.eq.s32.totalorder %s26, 1
      %p196 = por %p194, %p195
      %p198 = scmp.ne.s32.totalorder %s183, %s197
      %p199 = scmp.eq.s32.totalorder %s26, 0
      %p200 = por %p198, %p199
      %s202 = sadd.s32 %s201, 1
      %p205 = scmp.eq.s32.totalorder %s20, 1
      %p206 = scmp.ne.s32.totalorder %s201, %s203
      %p207 = scmp.eq.s32.totalorder %s20, 0
      %p208 = por %p206, %p207
      %p209 = scmp.ne.s32.totalorder %s201, %s203
      %p210 = scmp.eq.s32.totalorder %s25, 1
      %p211 = por %p209, %p210
      %p212 = scmp.ne.s32.totalorder %s203, %s204
      %p213 = scmp.eq.s32.totalorder %s25, 0
      %p214 = por %p212, %p213
      %p215 = scmp.ne.s32.totalorder %s203, %s204
      %p216 = scmp.eq.s32.totalorder %s26, 1
      %p217 = por %p215, %p216
      %p219 = scmp.ne.s32.totalorder %s204, %s218
      %p220 = scmp.eq.s32.totalorder %s26, 0
      %p221 = por %p219, %p220
      %s222 = ssub.s32 %s20, %s27
      %p223 = scmp.eq.s32.totalorder %s222, 0
      %s225 = sadd.s32 %s224, 1
      %s226 = scalar_select %p223, %s224, %s225
      %p229 = pneg %p223
      %p230 = scmp.eq.s32.totalorder %s20, 1
      %p231 = por %p229, %p230
      %p232 = scmp.ne.s32.totalorder %s224, %s227
      %p233 = scmp.eq.s32.totalorder %s20, 0
      %p234 = por %p232, %p233
      %p235 = scmp.ne.s32.totalorder %s224, %s227
      %p236 = scmp.eq.s32.totalorder %s25, 1
      %p237 = por %p235, %p236
      %p238 = scmp.ne.s32.totalorder %s227, %s228
      %p239 = scmp.eq.s32.totalorder %s25, 0
      %p240 = por %p238, %p239
      %p241 = scmp.ne.s32.totalorder %s227, %s228
      %p242 = scmp.eq.s32.totalorder %s26, 1
      %p243 = por %p241, %p242
      %p245 = scmp.ne.s32.totalorder %s228, %s244
      %p246 = scmp.eq.s32.totalorder %s26, 0
      %p247 = por %p245, %p246
      %p248 = scmp.le.s32.totalorder 1, %s20
      %p249 = scmp.lt.s32.totalorder %s20, 3
      %p250 = pnand %p248, %p249
      %p251 = pneg %p250
      // Predicated region
      $region9: #{tpu_custom_call.1} parent=5 // pred_check
        _
      $region10: #{tpu_custom_call.1} parent=5 // pred_check_branch
        %253 = sbr.rel (%p250) target = $region12
      $region11: #{tpu_custom_call.1} parent=5 // pred_region
        %s254 = ssub.s32 %s20, 1
        // Predicated region
        $region13: #{tpu_custom_call.1} parent=11 // pred_check
          %p255 = pneg %p67
        $region14: #{tpu_custom_call.1} parent=11 // pred_check_branch
          %257 = sbr.rel (%p255) target = $region16
        $region15: #{tpu_custom_call.1} parent=11 // pred_region
          _
        $region16: #{tpu_custom_call.1} parent=11 // pred_fallthru
          _
        // Predicated region
        $region17: #{tpu_custom_call.1} parent=11 // pred_check
          %p258 = pneg %p88
        $region18: #{tpu_custom_call.1} parent=11 // pred_check_branch
          %260 = sbr.rel (%p258) target = $region20
        $region19: #{tpu_custom_call.1} parent=11 // pred_region
          _
        $region20: #{tpu_custom_call.1} parent=11 // pred_fallthru
          _
        // Predicated region
        $region21: #{tpu_custom_call.1} parent=11 // pred_check
          %p261 = pneg %p109
        $region22: #{tpu_custom_call.1} parent=11 // pred_check_branch
          %263 = sbr.rel (%p261) target = $region24
        $region23: #{tpu_custom_call.1} parent=11 // pred_region
          %265 = vsyncadd [#allocation3], 0
          %s266 = sshll.u32 %s3, 4
          %s267 = int_to_ptr.hbm [resolvable:$true] %s266
          %s268 = sshll.u32 [#allocation2], 4
          %s269 = int_to_ptr.vmem [resolvable:$true] %s268
          %274 = dma.hbm_to_vmem [thread:$0]  %s267, 1024, %s269, [#allocation3], 64, 64, 4
        $region24: #{tpu_custom_call.1} parent=11 // pred_fallthru
          _
        // Predicated region
        $region25: #{tpu_custom_call.1} parent=11 // pred_check
          %p275 = pneg %p130
        $region26: #{tpu_custom_call.1} parent=11 // pred_check_branch
          %277 = sbr.rel (%p275) target = $region28
        $region27: #{tpu_custom_call.1} parent=11 // pred_region
          _
        $region28: #{tpu_custom_call.1} parent=11 // pred_fallthru
          _
        // Predicated region
        $region29: #{tpu_custom_call.1} parent=11 // pred_check
          %p278 = pneg %p151
        $region30: #{tpu_custom_call.1} parent=11 // pred_check_branch
          %280 = sbr.rel (%p278) target = $region32
        $region31: #{tpu_custom_call.1} parent=11 // pred_region
          %282 = vsyncadd [#allocation6], 0
          %s283 = sshll.u32 %s5, 4
          %s284 = int_to_ptr.hbm [resolvable:$true] %s283
          %s285 = sshll.u32 [#allocation5], 4
          %s286 = int_to_ptr.vmem [resolvable:$true] %s285
          %291 = dma.hbm_to_vmem [thread:$0]  %s284, 1024, %s286, [#allocation6], 64, 64, 4
        $region32: #{tpu_custom_call.1} parent=11 // pred_fallthru
          _
        // Predicated region
        $region33: #{tpu_custom_call.1} parent=11 // pred_check
          %p292 = pneg %p172
        $region34: #{tpu_custom_call.1} parent=11 // pred_check_branch
          %294 = sbr.rel (%p292) target = $region36
        $region35: #{tpu_custom_call.1} parent=11 // pred_region
          _
        $region36: #{tpu_custom_call.1} parent=11 // pred_fallthru
          _
        // Predicated region
        $region37: #{tpu_custom_call.1} parent=11 // pred_check
          %p295 = pneg %p193
        $region38: #{tpu_custom_call.1} parent=11 // pred_check_branch
          %297 = sbr.rel (%p295) target = $region40
        $region39: #{tpu_custom_call.1} parent=11 // pred_region
          %299 = vsyncadd [#allocation6], 0
          %s300 = sshll.u32 %s7, 4
          %s301 = int_to_ptr.hbm [resolvable:$true] %s300
          %s302 = sshll.u32 [#allocation7], 4
          %s303 = int_to_ptr.vmem [resolvable:$true] %s302
          %308 = dma.hbm_to_vmem [thread:$0]  %s301, 1024, %s303, [#allocation6], 64, 64, 4
        $region40: #{tpu_custom_call.1} parent=11 // pred_fallthru
          _
        // Predicated region
        $region41: #{tpu_custom_call.1} parent=11 // pred_check
          %p309 = pneg %p214
        $region42: #{tpu_custom_call.1} parent=11 // pred_check_branch
          %311 = sbr.rel (%p309) target = $region44
        $region43: #{tpu_custom_call.1} parent=11 // pred_region
          _
        $region44: #{tpu_custom_call.1} parent=11 // pred_fallthru
          _
      $region12: #{tpu_custom_call.1} parent=5 // pred_fallthru
        _
      %p312 = scmp.lt.s32.totalorder %s20, 2
      // Predicated region
      $region45: #{tpu_custom_call.1} parent=5 // pred_check
        %p313 = pneg %p312
      $region46: #{tpu_custom_call.1} parent=5 // pred_check_branch
        %315 = sbr.rel (%p313) target = $region48
      $region47: #{tpu_custom_call.1} parent=5 // pred_region
        // Predicated region
        $region49: #{tpu_custom_call.1} parent=47 // pred_check
          %p316 = pneg %p40
        $region50: #{tpu_custom_call.1} parent=47 // pred_check_branch
          %318 = sbr.rel (%p316) target = $region52
        $region51: #{tpu_custom_call.1} parent=47 // pred_region
          %s319 = smul.u32 4, %s20
          %p320 = scmp.lt.s32.totalorder %s319, 7
          %s321 = scalar_select %p320, %s319, 7
          %s322 = smul.addr %s321, 4
          %s323 = scalar_lea.vmem %s0, %s322
          %s324 = smul.u32 4, %s20
        $region52: #{tpu_custom_call.1} parent=47 // pred_fallthru
          _
      $region48: #{tpu_custom_call.1} parent=5 // pred_fallthru
        _
      %p325 = scmp.le.s32.totalorder 1, %s20
      %p326 = scmp.lt.s32.totalorder %s20, 3
      %p327 = pnand %p325, %p326
      %p328 = pneg %p327
      // Predicated region
      $region53: #{tpu_custom_call.1} parent=5 // pred_check
        _
      $region54: #{tpu_custom_call.1} parent=5 // pred_check_branch
        %330 = sbr.rel (%p327) target = $region56
      $region55: #{tpu_custom_call.1} parent=5 // pred_region
        %s331 = ssub.s32 %s20, 1
        // Predicated region
        $region57: #{tpu_custom_call.1} parent=55 // pred_check
          %p332 = pneg %p109
        $region58: #{tpu_custom_call.1} parent=55 // pred_check_branch
          %334 = sbr.rel (%p332) target = $region60
        $region59: #{tpu_custom_call.1} parent=55 // pred_region
          %336 = dma.done [#allocation3], 1024
        $region60: #{tpu_custom_call.1} parent=55 // pred_fallthru
          _
        // Predicated region
        $region61: #{tpu_custom_call.1} parent=55 // pred_check
          %p337 = pneg %p151
        $region62: #{tpu_custom_call.1} parent=55 // pred_check_branch
          %339 = sbr.rel (%p337) target = $region64
        $region63: #{tpu_custom_call.1} parent=55 // pred_region
          %341 = dma.done [#allocation6], 1024
        $region64: #{tpu_custom_call.1} parent=55 // pred_fallthru
          _
        // Predicated region
        $region65: #{tpu_custom_call.1} parent=55 // pred_check
          %p342 = pneg %p193
        $region66: #{tpu_custom_call.1} parent=55 // pred_check_branch
          %344 = sbr.rel (%p342) target = $region68
        $region67: #{tpu_custom_call.1} parent=55 // pred_region
          %346 = dma.done [#allocation6], 1024
        $region68: #{tpu_custom_call.1} parent=55 // pred_fallthru
          _
        %s347 = smul.u32 4, %s25
        %p348 = scmp.lt.s32.totalorder %s347, 7
        %s349 = scalar_select %p348, %s347, 7
        %s350 = smul.addr %s349, 4
        %s351 = scalar_lea.vmem %s0, %s350
        %p352 = pneg %p46
        %p353 = pneg %p43
        %p354 = pneg %p67
        %p355 = pneg %p64
        %p356 = pneg %p88
        %p357 = pneg %p85
        %p358 = pneg %p109
        %p359 = pneg %p106
        %p360 = pneg %p130
        %p361 = pneg %p127
        %p362 = pneg %p151
        %p363 = pneg %p148
        %p364 = pneg %p172
        %p365 = pneg %p169
        %p366 = pneg %p193
        %p367 = pneg %p190
        %p368 = pneg %p214
        %p369 = pneg %p211
        %p370 = pneg %p240
        %p371 = pneg %p237
        %s372 = sand.u32 %s227, 1
        %s373 = scalar_lea.sflag [#allocation4], %s372
        %s374 = sand.u32 %s227, 1
        %s375 = smul.addr %s374, 32
        %s376 = scalar_lea.vmem [#allocation8], %s375
        %s377 = smul.u32 4, %s25
        %p378 = scmp.lt.s32.totalorder %s377, 7
        %s379 = scalar_select %p378, %s377, 7
        %s380 = smul.addr %s379, 4
        %s381 = scalar_lea.vmem %s0, %s380
        %s382 = smul.u32 4, %s25
        %s383 = smul.u32 4, %s25
        %v385 = vld [vmem:[%s381] sm:$0xf]
        %v386 = vld [vmem:[%s381 + $0x4] sm:$0xf]
        %v387 = vld [vmem:[%s381 + $0x8] sm:$0xf]
        %v388 = vld [vmem:[%s381 + $0xc] sm:$0xf]
        %v389 = vld [vmem:[%s1] sm:$0xf]
        %v390 = vld [vmem:[%s1 + $0x4] sm:$0xf]
        %v391 = vld [vmem:[%s2] sm:$0x1]
        %v393 = vperm.slane %v391, 0
        %v399 = vunpack.c.l.b16 %v385
        %v400 = vunpack.c.l.b16 %v386
        %v401 = vunpack.c.l.b16 %v387
        %v402 = vunpack.c.l.b16 %v388
        %v403 = vpack.c.b16 %v400, %v399
        %v404 = vpack.c.b16 %v402, %v401
        %v407 = vunpack.c.l.b16 %v389
        %v408 = vunpack.c.l.b16 %v390
        %v409 = vpack.c.b16 %v408, %v407
        %vm411 = vcmask 130048
        %v413 = vsel %vm411, %v403, 0
        %v416 = vsel %vm411, %v404, 0
        %418 = vmatpush.bf16.msra.mxu0 0
        %419 = vmatpush.bf16.msra.mxu0 0
        %420 = vmatpush.bf16.msra.mxu0 0
        %421 = vmatpush.bf16.msra.mxu0 0
        %422 = vmatpush.bf16.msra.mxu0 0
        %423 = vmatpush.bf16.msra.mxu0 0
        %424 = vmatpush.bf16.msra.mxu0 0
        %425 = vmatpush.bf16.msra.mxu0 %v409
        %426 = vmatmul.bf16.gmra.mxu0 %v413
        %v427 = vpop.f32.mrf.mxu0
        %v428 = vadd.f32 %v393, %v427
        %v429 = vpop.f32.mrf.mxu0
        %v430 = vadd.f32 %v393, %v429
        %431 = vmatmul.bf16.gmra.mxu0 %v416
        %v432 = vpop.f32.mrf.mxu0
        %v433 = vadd.f32 %v393, %v432
        %v434 = vpop.f32.mrf.mxu0
        %v435 = vadd.f32 %v393, %v434
        %436 = vdwg.mxu0
        %v437 = vmax.f32 %v428, 0.0
        %v438 = vmax.f32 %v430, 0.0
        %v439 = vmax.f32 %v433, 0.0
        %v440 = vmax.f32 %v435, 0.0
        %v441 = vpack.c.bf16 %v438, %v437
        %v442 = vpack.c.bf16 %v440, %v439
        %v443 = vld [vmem:[#allocation2] sm:$0xf]
        %v444 = vld [vmem:[#allocation2 + $0x4] sm:$0xf]
        %v445 = vld [vmem:[#allocation2 + $0x8] sm:$0xf]
        %v446 = vld [vmem:[#allocation2 + $0xc] sm:$0xf]
        %v447 = vld [vmem:[#allocation2 + $0x10] sm:$0xf]
        %v448 = vld [vmem:[#allocation2 + $0x14] sm:$0xf]
        %v449 = vld [vmem:[#allocation2 + $0x18] sm:$0xf]
        %v450 = vld [vmem:[#allocation2 + $0x1c] sm:$0xf]
        %v451 = vld [vmem:[#allocation2 + $0x20] sm:$0xf]
        %v452 = vld [vmem:[#allocation2 + $0x24] sm:$0xf]
        %v453 = vld [vmem:[#allocation2 + $0x28] sm:$0xf]
        %v454 = vld [vmem:[#allocation2 + $0x2c] sm:$0xf]
        %v455 = vld [vmem:[#allocation2 + $0x30] sm:$0xf]
        %v456 = vld [vmem:[#allocation2 + $0x34] sm:$0xf]
        %v457 = vld [vmem:[#allocation2 + $0x38] sm:$0xf]
        %v458 = vld [vmem:[#allocation2 + $0x3c] sm:$0xf]
        %v459 = vld [vmem:[%s4] sm:$0x1]
        %v461 = vperm.slane %v459, 0
        %v479 = vunpack.c.l.b16 %v443
        %v480 = vunpack.c.l.b16 %v444
        %v481 = vunpack.c.l.b16 %v445
        %v482 = vunpack.c.l.b16 %v446
        %v483 = vunpack.c.l.b16 %v447
        %v484 = vunpack.c.l.b16 %v448
        %v485 = vunpack.c.l.b16 %v449
        %v486 = vunpack.c.l.b16 %v450
        %v487 = vunpack.c.l.b16 %v451
        %v488 = vunpack.c.l.b16 %v452
        %v489 = vunpack.c.l.b16 %v453
        %v490 = vunpack.c.l.b16 %v454
        %v491 = vunpack.c.l.b16 %v455
        %v492 = vunpack.c.l.b16 %v456
        %v493 = vunpack.c.l.b16 %v457
        %v494 = vunpack.c.l.b16 %v458
        %v495 = vpack.c.b16 %v480, %v479
        %v496 = vpack.c.b16 %v482, %v481
        %v497 = vpack.c.b16 %v484, %v483
        %v498 = vpack.c.b16 %v486, %v485
        %v499 = vpack.c.b16 %v488, %v487
        %v500 = vpack.c.b16 %v490, %v489
        %v501 = vpack.c.b16 %v492, %v491
        %v502 = vpack.c.b16 %v494, %v493
        %511 = vmatpush.bf16.msra.mxu0 %v502
        %512 = vmatpush.bf16.msra.mxu0 %v501
        %513 = vmatpush.bf16.msra.mxu0 %v500
        %514 = vmatpush.bf16.msra.mxu0 %v499
        %515 = vmatpush.bf16.msra.mxu0 %v498
        %516 = vmatpush.bf16.msra.mxu0 %v497
        %517 = vmatpush.bf16.msra.mxu0 %v496
        %518 = vmatpush.bf16.msra.mxu0 %v495
        %519 = vmatmul.bf16.gmra.mxu0 %v441
        %v520 = vpop.f32.mrf.mxu0
        %v521 = vadd.f32 %v461, %v520
        %v522 = vpop.f32.mrf.mxu0
        %v523 = vadd.f32 %v461, %v522
        %524 = vmatmul.bf16.gmra.mxu0 %v442
        %v525 = vpop.f32.mrf.mxu0
        %v526 = vadd.f32 %v461, %v525
        %v527 = vpop.f32.mrf.mxu0
        %v528 = vadd.f32 %v461, %v527
        %529 = vdwg.mxu0
        %v530 = vmax.f32 %v521, 0.0
        %v531 = vmax.f32 %v523, 0.0
        %v532 = vmax.f32 %v526, 0.0
        %v533 = vmax.f32 %v528, 0.0
        %v534 = vpack.c.bf16 %v531, %v530
        %v535 = vpack.c.bf16 %v533, %v532
        %v536 = vld [vmem:[#allocation5] sm:$0xf]
        %v537 = vld [vmem:[#allocation5 + $0x4] sm:$0xf]
        %v538 = vld [vmem:[#allocation5 + $0x8] sm:$0xf]
        %v539 = vld [vmem:[#allocation5 + $0xc] sm:$0xf]
        %v540 = vld [vmem:[#allocation5 + $0x10] sm:$0xf]
        %v541 = vld [vmem:[#allocation5 + $0x14] sm:$0xf]
        %v542 = vld [vmem:[#allocation5 + $0x18] sm:$0xf]
        %v543 = vld [vmem:[#allocation5 + $0x1c] sm:$0xf]
        %v544 = vld [vmem:[#allocation5 + $0x20] sm:$0xf]
        %v545 = vld [vmem:[#allocation5 + $0x24] sm:$0xf]
        %v546 = vld [vmem:[#allocation5 + $0x28] sm:$0xf]
        %v547 = vld [vmem:[#allocation5 + $0x2c] sm:$0xf]
        %v548 = vld [vmem:[#allocation5 + $0x30] sm:$0xf]
        %v549 = vld [vmem:[#allocation5 + $0x34] sm:$0xf]
        %v550 = vld [vmem:[#allocation5 + $0x38] sm:$0xf]
        %v551 = vld [vmem:[#allocation5 + $0x3c] sm:$0xf]
        %v552 = vld [vmem:[%s6] sm:$0x1]
        %v554 = vperm.slane %v552, 0
        %v572 = vunpack.c.l.b16 %v536
        %v573 = vunpack.c.l.b16 %v537
        %v574 = vunpack.c.l.b16 %v538
        %v575 = vunpack.c.l.b16 %v539
        %v576 = vunpack.c.l.b16 %v540
        %v577 = vunpack.c.l.b16 %v541
        %v578 = vunpack.c.l.b16 %v542
        %v579 = vunpack.c.l.b16 %v543
        %v580 = vunpack.c.l.b16 %v544
        %v581 = vunpack.c.l.b16 %v545
        %v582 = vunpack.c.l.b16 %v546
        %v583 = vunpack.c.l.b16 %v547
        %v584 = vunpack.c.l.b16 %v548
        %v585 = vunpack.c.l.b16 %v549
        %v586 = vunpack.c.l.b16 %v550
        %v587 = vunpack.c.l.b16 %v551
        %v588 = vpack.c.b16 %v573, %v572
        %v589 = vpack.c.b16 %v575, %v574
        %v590 = vpack.c.b16 %v577, %v576
        %v591 = vpack.c.b16 %v579, %v578
        %v592 = vpack.c.b16 %v581, %v580
        %v593 = vpack.c.b16 %v583, %v582
        %v594 = vpack.c.b16 %v585, %v584
        %v595 = vpack.c.b16 %v587, %v586
        %604 = vmatpush.bf16.msra.mxu0 %v595
        %605 = vmatpush.bf16.msra.mxu0 %v594
        %606 = vmatpush.bf16.msra.mxu0 %v593
        %607 = vmatpush.bf16.msra.mxu0 %v592
        %608 = vmatpush.bf16.msra.mxu0 %v591
        %609 = vmatpush.bf16.msra.mxu0 %v590
        %610 = vmatpush.bf16.msra.mxu0 %v589
        %611 = vmatpush.bf16.msra.mxu0 %v588
        %612 = vmatmul.bf16.gmra.mxu0 %v534
        %v613 = vpop.f32.mrf.mxu0
        %v614 = vadd.f32 %v554, %v613
        %v615 = vpop.f32.mrf.mxu0
        %v616 = vadd.f32 %v554, %v615
        %617 = vmatmul.bf16.gmra.mxu0 %v535
        %v618 = vpop.f32.mrf.mxu0
        %v619 = vadd.f32 %v554, %v618
        %v620 = vpop.f32.mrf.mxu0
        %v621 = vadd.f32 %v554, %v620
        %622 = vdwg.mxu0
        %v623 = vmax.f32 %v614, 0.0
        %v624 = vmax.f32 %v616, 0.0
        %v625 = vmax.f32 %v619, 0.0
        %v626 = vmax.f32 %v621, 0.0
        %v627 = vpack.c.bf16 %v624, %v623
        %v628 = vpack.c.bf16 %v626, %v625
        %v629 = vld [vmem:[#allocation7] sm:$0xf]
        %v630 = vld [vmem:[#allocation7 + $0x4] sm:$0xf]
        %v631 = vld [vmem:[#allocation7 + $0x8] sm:$0xf]
        %v632 = vld [vmem:[#allocation7 + $0xc] sm:$0xf]
        %v633 = vld [vmem:[#allocation7 + $0x10] sm:$0xf]
        %v634 = vld [vmem:[#allocation7 + $0x14] sm:$0xf]
        %v635 = vld [vmem:[#allocation7 + $0x18] sm:$0xf]
        %v636 = vld [vmem:[#allocation7 + $0x1c] sm:$0xf]
        %v637 = vld [vmem:[#allocation7 + $0x20] sm:$0xf]
        %v638 = vld [vmem:[#allocation7 + $0x24] sm:$0xf]
        %v639 = vld [vmem:[#allocation7 + $0x28] sm:$0xf]
        %v640 = vld [vmem:[#allocation7 + $0x2c] sm:$0xf]
        %v641 = vld [vmem:[#allocation7 + $0x30] sm:$0xf]
        %v642 = vld [vmem:[#allocation7 + $0x34] sm:$0xf]
        %v643 = vld [vmem:[#allocation7 + $0x38] sm:$0xf]
        %v644 = vld [vmem:[#allocation7 + $0x3c] sm:$0xf]
        %v645 = vld [vmem:[%s8] sm:$0x1]
        %v647 = vperm.slane %v645, 0
        %v665 = vunpack.c.l.b16 %v629
        %v666 = vunpack.c.l.b16 %v630
        %v667 = vunpack.c.l.b16 %v631
        %v668 = vunpack.c.l.b16 %v632
        %v669 = vunpack.c.l.b16 %v633
        %v670 = vunpack.c.l.b16 %v634
        %v671 = vunpack.c.l.b16 %v635
        %v672 = vunpack.c.l.b16 %v636
        %v673 = vunpack.c.l.b16 %v637
        %v674 = vunpack.c.l.b16 %v638
        %v675 = vunpack.c.l.b16 %v639
        %v676 = vunpack.c.l.b16 %v640
        %v677 = vunpack.c.l.b16 %v641
        %v678 = vunpack.c.l.b16 %v642
        %v679 = vunpack.c.l.b16 %v643
        %v680 = vunpack.c.l.b16 %v644
        %v681 = vpack.c.b16 %v666, %v665
        %v682 = vpack.c.b16 %v668, %v667
        %v683 = vpack.c.b16 %v670, %v669
        %v684 = vpack.c.b16 %v672, %v671
        %v685 = vpack.c.b16 %v674, %v673
        %v686 = vpack.c.b16 %v676, %v675
        %v687 = vpack.c.b16 %v678, %v677
        %v688 = vpack.c.b16 %v680, %v679
        %697 = vmatpush.bf16.msra.mxu0 %v688
        %698 = vmatpush.bf16.msra.mxu0 %v687
        %699 = vmatpush.bf16.msra.mxu0 %v686
        %700 = vmatpush.bf16.msra.mxu0 %v685
        %701 = vmatpush.bf16.msra.mxu0 %v684
        %702 = vmatpush.bf16.msra.mxu0 %v683
        %703 = vmatpush.bf16.msra.mxu0 %v682
        %704 = vmatpush.bf16.msra.mxu0 %v681
        %705 = vmatmul.bf16.gmra.mxu0 %v627
        %v706 = vpop.f32.mrf.mxu0
        %v707 = vadd.f32 %v647, %v706
        %v708 = vpop.f32.mrf.mxu0
        %v709 = vadd.f32 %v647, %v708
        %710 = vmatmul.bf16.gmra.mxu0 %v628
        %v711 = vpop.f32.mrf.mxu0
        %v712 = vadd.f32 %v647, %v711
        %v713 = vpop.f32.mrf.mxu0
        %v714 = vadd.f32 %v647, %v713
        %715 = vdwg.mxu0
        %716 = vst [vmem:[%s376] sm:$0xff] %v707
        %717 = vst [vmem:[%s376 + $0x8] sm:$0xff] %v709
        %718 = vst [vmem:[%s376 + $0x10] sm:$0xff] %v712
        %719 = vst [vmem:[%s376 + $0x18] sm:$0xff] %v714
        %s720 = sand.u32 %s227, 1
        %s721 = scalar_lea.sflag [#allocation4], %s720
        %s722 = sand.u32 %s227, 1
        %s723 = smul.addr %s722, 32
        %s724 = scalar_lea.vmem [#allocation8], %s723
        // Predicated region
        $region69: #{tpu_custom_call.1} parent=55 // pred_check
          %p725 = pneg %p237
        $region70: #{tpu_custom_call.1} parent=55 // pred_check_branch
          %727 = sbr.rel (%p725) target = $region72
        $region71: #{tpu_custom_call.1} parent=55 // pred_region
          %s728 = smul.u32 4, %s25
          %730 = vsyncadd %s721, 0
          %s731 = smul.addr %s728, 8
          %s732 = scalar_lea.hbm %s9, %s731
          %s733 = sshll.u32 %s724, 4
          %s734 = int_to_ptr.vmem [resolvable:$true] %s733
          %s735 = sshll.u32 %s732, 4
          %s736 = int_to_ptr.hbm [resolvable:$true] %s735
          %741 = dma.vmem_to_hbm [thread:$0]  %s734, 512, %s736, %s721, 128, 128, 8
        $region72: #{tpu_custom_call.1} parent=55 // pred_fallthru
          _
      $region56: #{tpu_custom_call.1} parent=5 // pred_fallthru
        _
      %p742 = scmp.le.s32.totalorder 2, %s20
      // Predicated region
      $region73: #{tpu_custom_call.1} parent=5 // pred_check
        %p743 = pneg %p742
      $region74: #{tpu_custom_call.1} parent=5 // pred_check_branch
        %745 = sbr.rel (%p743) target = $region76
      $region75: #{tpu_custom_call.1} parent=5 // pred_region
        %s746 = ssub.s32 %s20, 2
        // Predicated region
        $region77: #{tpu_custom_call.1} parent=75 // pred_check
          %p747 = pneg %p243
        $region78: #{tpu_custom_call.1} parent=75 // pred_check_branch
          %749 = sbr.rel (%p747) target = $region80
        $region79: #{tpu_custom_call.1} parent=75 // pred_region
          %s750 = sand.u32 %s228, 1
          %s751 = scalar_lea.sflag [#allocation4], %s750
          %s752 = sand.u32 %s228, 1
          %s753 = smul.addr %s752, 32
          %s754 = scalar_lea.vmem [#allocation8], %s753
          %756 = dma.done %s751, 512
        $region80: #{tpu_custom_call.1} parent=75 // pred_fallthru
          _
      $region76: #{tpu_custom_call.1} parent=5 // pred_fallthru
        _
    $region6: #{tpu_custom_call.1} parent=1 // loop_footer
      %s24 = sadd.s32 1, %s20
    $region7: #{tpu_custom_call.1} parent=1 // loop_footer_branch
      %19 = sbr.rel target = $region3
    $region8: #{tpu_custom_call.1} parent=1 // loop_exit
      _
    %757 = vsyncpa [#allocation3], 1
    %s758 = scalar_lea.sflag [#allocation3], 1
    %759 = vsyncpa %s758, 1
    %760 = vsyncpa [#allocation6], 1
    %761 = vsyncpa [#allocation4], 1
    %s762 = scalar_lea.sflag [#allocation4], 1
    %763 = vsyncpa %s762, 1

</llo_original>
